<compile_context>
chip_gen: v5e
topology: v5e:2x2
jax: 0.10.0
libtpu: 0.0.40
codegen_flags: <defaults>
</compile_context>

<pallas_src>
import jax
import jax.numpy as jnp
from jax.experimental import pallas as pl
from jax.experimental.pallas import tpu as pltpu

# limits (same constants as the PyTorch script)
ADC_LB, ADC_UB = 0.1, 3.5
SIG_LB, SIG_UB = 0.0, 1.0
AXR_LB, AXR_UB = 0.1, 20.0


def _round_up(x, m):
    return ((x + m - 1) // m) * m


def _softplus(x):
    # numerically stable softplus, matches torch.nn.functional.softplus
    return jnp.maximum(x, 0.0) + jnp.log1p(jnp.exp(-jnp.abs(x)))


def _prelu(x, a):
    # torch.nn.PReLU with a single learnable slope `a`
    return jnp.maximum(x, 0.0) + a * jnp.minimum(x, 0.0)


def fexi_kernel(x_ref,
                w1_ref, b1_ref, w2_ref, b2_ref,
                w3_ref, b3_ref, w4_ref, b4_ref,
                neg_be_ref, neg_tm_ref,
                a1_ref, a2_ref, a3_ref,
                evox_ref, adcp_ref, par_ref):
    # x tile: (N, TILE_B) -- measurements on sublanes, voxels on lanes.
    x = x_ref[...]

    # --- encoder MLP: h = W @ x + b (== (x_row @ W.T + b) in torch layout) ---
    h = jnp.dot(w1_ref[...], x, preferred_element_type=jnp.float32) + b1_ref[...]
    h = _prelu(h, a1_ref[0])
    h = jnp.dot(w2_ref[...], h, preferred_element_type=jnp.float32) + b2_ref[...]
    h = _prelu(h, a2_ref[0])
    h = jnp.dot(w3_ref[...], h, preferred_element_type=jnp.float32) + b3_ref[...]
    h = _prelu(h, a3_ref[0])
    p = jnp.dot(w4_ref[...], h, preferred_element_type=jnp.float32) + b4_ref[...]  # (3, TB)

    p = _softplus(p)                                            # (3, TB)

    adc = jnp.clip(p[0:1, :], ADC_LB, ADC_UB)                   # (1, TB)
    # softplus >= 0 == SIG_LB, so only the upper clamp is needed (same result).
    sigma = jnp.minimum(p[1:2, :], SIG_UB)                      # (1, TB)
    axr = jnp.clip(p[2:3, :], AXR_LB, AXR_UB)                   # (1, TB)

    # neg_tm holds -inf where torch sets tm = inf; since axr >= AXR_LB = 0.1 > 0,
    # exp(neg_tm * axr) == 0 there, exactly matching exp(-inf * axr) in torch.
    exp_term = jnp.exp(neg_tm_ref[...] * axr)                   # (N,1)*(1,TB) -> (N,TB)
    adc_prime = adc * (1.0 - sigma * exp_term)                  # (N, TB)
    e_vox = jnp.exp(neg_be_ref[...] * adc_prime)                # (N, TB)

    evox_ref[...] = e_vox.astype(evox_ref.dtype)
    adcp_ref[...] = adc_prime.astype(adcp_ref.dtype)
    par_ref[...] = jnp.concatenate([adc, sigma, axr], axis=0).astype(par_ref.dtype)


def fexi_forward(x, params, be, bf, tm, *, tile_b=4096, out_dtype=jnp.float32):
    """params = (w1, b1, a1, w2, b2, a2, w3, b3, a3, w4, b4) in torch layout:
    w: (out, in), b: (out,), a: (1,) PReLU slope."""
    w1, b1, a1, w2, b2, a2, w3, b3, a3, w4, b4 = params
    B, N = x.shape

    # pick a lane-dense tile (multiple of 128), pad B up to a multiple of it
    tile_b = _round_up(max(128, min(int(tile_b), _round_up(B, 128))), 128)
    B_pad = _round_up(B, tile_b)
    grid = (B_pad // tile_b,)

    # transpose so voxels sit on the lane axis; pad the batch
    x_t = x.astype(jnp.float32).T                               # (N, B)
    if B_pad != B:
        x_t = jnp.pad(x_t, ((0, 0), (0, B_pad - B)))

    be = jnp.asarray(be, jnp.float32).reshape(N, 1)
    bf = jnp.asarray(bf, jnp.float32).reshape(N, 1)
    tm = jnp.asarray(tm, jnp.float32).reshape(N, 1)

    # precompute acquisition constants once (hoisted out of the kernel):
    # torch does tm[(tm == min(tm)) & (bf == 0)] = inf; fold that into -tm.
    mask = jnp.logical_and(tm == jnp.min(tm), bf == 0.0)
    neg_tm = jnp.where(mask, -jnp.inf, -tm)                     # (N, 1)
    neg_be = -be                                                # (N, 1)

    f32 = lambda a: jnp.asarray(a, jnp.float32)
    w1, w2, w3 = f32(w1), f32(w2), f32(w3)                      # (N, N)
    w4 = f32(w4)                                                # (3, N)
    b1c, b2c, b3c = f32(b1).reshape(N, 1), f32(b2).reshape(N, 1), f32(b3).reshape(N, 1)
    b4c = f32(b4).reshape(3, 1)
    a1s, a2s, a3s = f32(a1).reshape(1), f32(a2).reshape(1), f32(a3).reshape(1)

    col = lambda rows: pl.BlockSpec((rows, tile_b), lambda i: (0, i))
    full = lambda shape: pl.BlockSpec(shape, lambda i: (0, 0))
    smem = pl.BlockSpec((1,), lambda i: (0,),
                        memory_space=pltpu.MemorySpace.SMEM)

    in_specs = [
        col(N),                         # x_t tile (streamed)
        full((N, N)), full((N, 1)),     # w1, b1   (VMEM-resident)
        full((N, N)), full((N, 1)),     # w2, b2
        full((N, N)), full((N, 1)),     # w3, b3
        full((3, N)), full((3, 1)),     # w4, b4
        full((N, 1)), full((N, 1)),     # neg_be, neg_tm
        smem, smem, smem,               # PReLU slopes on the scalar path
    ]
    out_specs = (col(N), col(N), col(3))
    out_shape = (
        jax.ShapeDtypeStruct((N, B_pad), out_dtype),            # E_vox^T
        jax.ShapeDtypeStruct((N, B_pad), out_dtype),            # adc_prime^T
        jax.ShapeDtypeStruct((3, B_pad), jnp.float32),          # [adc; sigma; axr]
    )

    # VMEM budget: double-buffered streamed tiles + resident weights + headroom
    streamed_bytes = 2 * 4 * tile_b * (3 * N + 8)
    vmem_limit = int(min(32 << 20, streamed_bytes + (8 << 20)))

    # advisory cost: this kernel is HBM-bandwidth bound, not flop bound
    flops = int(B_pad * (2 * N * (3 * N + 3) + 12 * N))
    transcendentals = int(B_pad * (2 * N + 6))
    bytes_accessed = int(4 * B_pad * (3 * N + 3) + 4 * (3 * N * N + 3 * N + 8 * N + 6))

    evox_t, adcp_t, par_t = pl.pallas_call(
        fexi_kernel,
        grid=grid,
        out_shape=out_shape,
        in_specs=in_specs,
        out_specs=out_specs,
        compiler_params=pltpu.CompilerParams(
            dimension_semantics=("parallel",),
            vmem_limit_bytes=vmem_limit,
        ),
        cost_estimate=pl.CostEstimate(
            flops=flops,
            transcendentals=transcendentals,
            bytes_accessed=bytes_accessed,
        ),
    )(x_t,
      w1, b1c, w2, b2c, w3, b3c, w4, b4c,
      neg_be, neg_tm,
      a1s, a2s, a3s)

    # back to the PyTorch-facing layout (layout plumbing only)
    e_vox = evox_t[:, :B].T                                     # (B, N)
    adc_prime = adcp_t[:, :B].T                                 # (B, N)
    adc = par_t[0, :B].reshape(B, 1)
    sigma = par_t[1, :B].reshape(B, 1)
    axr = par_t[2, :B].reshape(B, 1)
    return e_vox, adc_prime, adc, sigma, axr


def fexi_reference(x, params, be, bf, tm):
    """Pure-JAX reference with the original (B, N) layout / torch semantics."""
    w1, b1, a1, w2, b2, a2, w3, b3, a3, w4, b4 = params
    hp = jax.lax.Precision.HIGHEST

    def lin(h, w, b):
        return jnp.dot(h, w.T, precision=hp) + b

    def prelu(h, a):
        return jnp.maximum(h, 0.0) + a * jnp.minimum(h, 0.0)

    h = prelu(lin(x, w1, b1), a1[0])
    h = prelu(lin(h, w2, b2), a2[0])
    h = prelu(lin(h, w3, b3), a3[0])
    p = jax.nn.softplus(lin(h, w4, b4))

    adc = jnp.clip(p[:, 0:1], ADC_LB, ADC_UB)
    sigma = jnp.clip(p[:, 1:2], SIG_LB, SIG_UB)
    axr = jnp.clip(p[:, 2:3], AXR_LB, AXR_UB)

    tm_inf = jnp.where((tm == jnp.min(tm)) & (bf == 0.0), jnp.inf, tm)
    adc_prime = adc * (1.0 - sigma * jnp.exp(-tm_inf[None, :] * axr))
    e_vox = jnp.exp(-adc_prime * be[None, :])
    return e_vox, adc_prime, adc, sigma, axr


def init_params(key, n):
    """Deterministic init mimicking PyTorch defaults (U(+-1/sqrt(fan_in)), PReLU=0.25).
    Weights are stored in torch layout (out, in); biases as (out,)."""
    params = []
    dims = [(n, n), (n, n), (n, n), (n, 3)]  # (fan_in, fan_out)
    for i, (fin, fout) in enumerate(dims):
        key, kw, kb = jax.random.split(key, 3)
        bound = float(fin) ** -0.5
        w = jax.random.uniform(kw, (fout, fin), jnp.float32, -bound, bound)
        b = jax.random.uniform(kb, (fout,), jnp.float32, -bound, bound)
        params.append(w)
        params.append(b)
        if i < 3:
            params.append(jnp.full((1,), 0.25, jnp.float32))  # PReLU slope
    return tuple(params)


if __name__ == "__main__":
    B, N = 8, 16  # B voxels, N = len(be) measurements

    key = jax.random.PRNGKey(0)
    key, k_x = jax.random.split(key)

    # deterministic FEXI-like acquisition parameters
    be = jnp.concatenate([jnp.zeros(4), jnp.linspace(0.05, 0.25, N - 4)]).astype(jnp.float32)
    bf = jnp.concatenate([jnp.zeros(4), jnp.full((N - 4,), 0.9)]).astype(jnp.float32)
    tm = jnp.concatenate([jnp.full((4,), 0.025),
                          jnp.linspace(0.025, 0.4, N - 4)]).astype(jnp.float32)

    net_params = init_params(key, N)

    # synthetic input signals in (0, 1)
    x = jax.random.uniform(k_x, (B, N), jnp.float32, 0.1, 1.0)

    outs = fexi_forward(x, net_params, be, bf, tm)
    outs = jax.block_until_ready(outs)
    refs = fexi_reference(x, net_params, be, bf, tm)

    e_vox, adc_prime, adc, sigma, axr = outs
    assert e_vox.shape == (B, N) and adc_prime.shape == (B, N)
    assert adc.shape == (B, 1) and sigma.shape == (B, 1) and axr.shape == (B, 1)
    for o, r in zip(outs, refs):
        assert bool(jnp.all(jnp.isfinite(o)))
        assert bool(jnp.allclose(o, r, rtol=1e-3, atol=1e-3))

    print("KERNEL_OK")
</pallas_src>

<mosaic_0001>
module attributes {stable_mosaic.version = 11 : i64} {
  func.func @fexi_kernel(%arg0: i32, %arg1: memref<16x128xf32, #tpu.memory_space<vmem>>, %arg2: memref<16x16xf32, #tpu.memory_space<vmem>>, %arg3: memref<16x1xf32, #tpu.memory_space<vmem>>, %arg4: memref<16x16xf32, #tpu.memory_space<vmem>>, %arg5: memref<16x1xf32, #tpu.memory_space<vmem>>, %arg6: memref<16x16xf32, #tpu.memory_space<vmem>>, %arg7: memref<16x1xf32, #tpu.memory_space<vmem>>, %arg8: memref<3x16xf32, #tpu.memory_space<vmem>>, %arg9: memref<3x1xf32, #tpu.memory_space<vmem>>, %arg10: memref<16x1xf32, #tpu.memory_space<vmem>>, %arg11: memref<16x1xf32, #tpu.memory_space<vmem>>, %arg12: memref<1xf32, #tpu.memory_space<smem>>, %arg13: memref<1xf32, #tpu.memory_space<smem>>, %arg14: memref<1xf32, #tpu.memory_space<smem>>, %arg15: memref<16x128xf32, #tpu.memory_space<vmem>>, %arg16: memref<16x128xf32, #tpu.memory_space<vmem>>, %arg17: memref<3x128xf32, #tpu.memory_space<vmem>>) attributes {dimension_semantics = [#tpu.dimension_semantics<parallel>], iteration_bounds = array<i64: 1>, scalar_prefetch = 0 : i64, scratch_operands = 0 : i64, tpu.core_type = #tpu.core_type<tc>, window_params = [{transform_indices = @transform_0, window_bounds = array<i64: 16, 128>}, {pipeline_mode = #tpu.pipeline_mode<synchronous>, transform_indices = @transform_1, window_bounds = array<i64: 16, 16>}, {pipeline_mode = #tpu.pipeline_mode<synchronous>, transform_indices = @transform_2, window_bounds = array<i64: 16, 1>}, {pipeline_mode = #tpu.pipeline_mode<synchronous>, transform_indices = @transform_3, window_bounds = array<i64: 16, 16>}, {pipeline_mode = #tpu.pipeline_mode<synchronous>, transform_indices = @transform_4, window_bounds = array<i64: 16, 1>}, {pipeline_mode = #tpu.pipeline_mode<synchronous>, transform_indices = @transform_5, window_bounds = array<i64: 16, 16>}, {pipeline_mode = #tpu.pipeline_mode<synchronous>, transform_indices = @transform_6, window_bounds = array<i64: 16, 1>}, {pipeline_mode = #tpu.pipeline_mode<synchronous>, transform_indices = @transform_7, window_bounds = array<i64: 3, 16>}, {pipeline_mode = #tpu.pipeline_mode<synchronous>, transform_indices = @transform_8, window_bounds = array<i64: 3, 1>}, {pipeline_mode = #tpu.pipeline_mode<synchronous>, transform_indices = @transform_9, window_bounds = array<i64: 16, 1>}, {pipeline_mode = #tpu.pipeline_mode<synchronous>, transform_indices = @transform_10, window_bounds = array<i64: 16, 1>}, {transform_indices = @transform_11, window_bounds = array<i64: 1>}, {transform_indices = @transform_12, window_bounds = array<i64: 1>}, {transform_indices = @transform_13, window_bounds = array<i64: 1>}, {transform_indices = @transform_14, window_bounds = array<i64: 16, 128>}, {transform_indices = @transform_15, window_bounds = array<i64: 16, 128>}, {transform_indices = @transform_16, window_bounds = array<i64: 3, 128>}]} {
    %c0 = arith.constant 0 : index
    %c0_0 = arith.constant 0 : index
    %0 = vector.load %arg1[%c0, %c0_0] : memref<16x128xf32, #tpu.memory_space<vmem>>, vector<16x128xf32>
    %c0_1 = arith.constant 0 : index
    %c0_2 = arith.constant 0 : index
    %1 = vector.load %arg2[%c0_1, %c0_2] : memref<16x16xf32, #tpu.memory_space<vmem>>, vector<16x16xf32>
    %cst = arith.constant dense<0.000000e+00> : vector<16x128xf32>
    %2 = tpu.matmul %1, %0, %cst {dimension_numbers = #tpu.dot_dimension_numbers<[1], [0], [0], [1], [0, 0, 1, 1], [], []>} : vector<16x16xf32>, vector<16x128xf32>, vector<16x128xf32> -> vector<16x128xf32>
    %c0_3 = arith.constant 0 : index
    %c0_4 = arith.constant 0 : index
    %3 = vector.load %arg3[%c0_3, %c0_4] : memref<16x1xf32, #tpu.memory_space<vmem>>, vector<16x1xf32>
    %4 = vector.broadcast %3 : vector<16x1xf32> to vector<16x128xf32>
    %5 = arith.addf %2, %4 : vector<16x128xf32>
    %c0_5 = arith.constant 0 : index
    %6 = memref.load %arg12[%c0_5] : memref<1xf32, #tpu.memory_space<smem>>
    %cst_6 = arith.constant 0.000000e+00 : f32
    %7 = vector.broadcast %cst_6 : f32 to vector<16x128xf32>
    %8 = arith.maximumf %5, %7 : vector<16x128xf32>
    %cst_7 = arith.constant 0.000000e+00 : f32
    %9 = vector.broadcast %cst_7 : f32 to vector<16x128xf32>
    %10 = arith.minimumf %5, %9 : vector<16x128xf32>
    %11 = vector.broadcast %6 : f32 to vector<16x128xf32>
    %12 = arith.mulf %11, %10 : vector<16x128xf32>
    %13 = arith.addf %8, %12 : vector<16x128xf32>
    %c0_8 = arith.constant 0 : index
    %c0_9 = arith.constant 0 : index
    %14 = vector.load %arg4[%c0_8, %c0_9] : memref<16x16xf32, #tpu.memory_space<vmem>>, vector<16x16xf32>
    %cst_10 = arith.constant dense<0.000000e+00> : vector<16x128xf32>
    %15 = tpu.matmul %14, %13, %cst_10 {dimension_numbers = #tpu.dot_dimension_numbers<[1], [0], [0], [1], [0, 0, 1, 1], [], []>} : vector<16x16xf32>, vector<16x128xf32>, vector<16x128xf32> -> vector<16x128xf32>
    %c0_11 = arith.constant 0 : index
    %c0_12 = arith.constant 0 : index
    %16 = vector.load %arg5[%c0_11, %c0_12] : memref<16x1xf32, #tpu.memory_space<vmem>>, vector<16x1xf32>
    %17 = vector.broadcast %16 : vector<16x1xf32> to vector<16x128xf32>
    %18 = arith.addf %15, %17 : vector<16x128xf32>
    %c0_13 = arith.constant 0 : index
    %19 = memref.load %arg13[%c0_13] : memref<1xf32, #tpu.memory_space<smem>>
    %cst_14 = arith.constant 0.000000e+00 : f32
    %20 = vector.broadcast %cst_14 : f32 to vector<16x128xf32>
    %21 = arith.maximumf %18, %20 : vector<16x128xf32>
    %cst_15 = arith.constant 0.000000e+00 : f32
    %22 = vector.broadcast %cst_15 : f32 to vector<16x128xf32>
    %23 = arith.minimumf %18, %22 : vector<16x128xf32>
    %24 = vector.broadcast %19 : f32 to vector<16x128xf32>
    %25 = arith.mulf %24, %23 : vector<16x128xf32>
    %26 = arith.addf %21, %25 : vector<16x128xf32>
    %c0_16 = arith.constant 0 : index
    %c0_17 = arith.constant 0 : index
    %27 = vector.load %arg6[%c0_16, %c0_17] : memref<16x16xf32, #tpu.memory_space<vmem>>, vector<16x16xf32>
    %cst_18 = arith.constant dense<0.000000e+00> : vector<16x128xf32>
    %28 = tpu.matmul %27, %26, %cst_18 {dimension_numbers = #tpu.dot_dimension_numbers<[1], [0], [0], [1], [0, 0, 1, 1], [], []>} : vector<16x16xf32>, vector<16x128xf32>, vector<16x128xf32> -> vector<16x128xf32>
    %c0_19 = arith.constant 0 : index
    %c0_20 = arith.constant 0 : index
    %29 = vector.load %arg7[%c0_19, %c0_20] : memref<16x1xf32, #tpu.memory_space<vmem>>, vector<16x1xf32>
    %30 = vector.broadcast %29 : vector<16x1xf32> to vector<16x128xf32>
    %31 = arith.addf %28, %30 : vector<16x128xf32>
    %c0_21 = arith.constant 0 : index
    %32 = memref.load %arg14[%c0_21] : memref<1xf32, #tpu.memory_space<smem>>
    %cst_22 = arith.constant 0.000000e+00 : f32
    %33 = vector.broadcast %cst_22 : f32 to vector<16x128xf32>
    %34 = arith.maximumf %31, %33 : vector<16x128xf32>
    %cst_23 = arith.constant 0.000000e+00 : f32
    %35 = vector.broadcast %cst_23 : f32 to vector<16x128xf32>
    %36 = arith.minimumf %31, %35 : vector<16x128xf32>
    %37 = vector.broadcast %32 : f32 to vector<16x128xf32>
    %38 = arith.mulf %37, %36 : vector<16x128xf32>
    %39 = arith.addf %34, %38 : vector<16x128xf32>
    %c0_24 = arith.constant 0 : index
    %c0_25 = arith.constant 0 : index
    %40 = vector.load %arg8[%c0_24, %c0_25] : memref<3x16xf32, #tpu.memory_space<vmem>>, vector<3x16xf32>
    %cst_26 = arith.constant dense<0.000000e+00> : vector<3x128xf32>
    %41 = tpu.matmul %40, %39, %cst_26 {dimension_numbers = #tpu.dot_dimension_numbers<[1], [0], [0], [1], [0, 0, 1, 1], [], []>} : vector<3x16xf32>, vector<16x128xf32>, vector<3x128xf32> -> vector<3x128xf32>
    %c0_27 = arith.constant 0 : index
    %c0_28 = arith.constant 0 : index
    %42 = vector.load %arg9[%c0_27, %c0_28] : memref<3x1xf32, #tpu.memory_space<vmem>>, vector<3x1xf32>
    %43 = vector.broadcast %42 : vector<3x1xf32> to vector<3x128xf32>
    %44 = arith.addf %41, %43 : vector<3x128xf32>
    %cst_29 = arith.constant 0.000000e+00 : f32
    %45 = vector.broadcast %cst_29 : f32 to vector<3x128xf32>
    %46 = arith.maximumf %44, %45 : vector<3x128xf32>
    %47 = math.absf %44 : vector<3x128xf32>
    %cst_30 = arith.constant 0.000000e+00 : f32
    %48 = vector.broadcast %cst_30 : f32 to vector<3x128xf32>
    %49 = arith.subf %48, %47 : vector<3x128xf32>
    %50 = math.exp %49 : vector<3x128xf32>
    %51 = math.log1p %50 : vector<3x128xf32>
    %52 = arith.addf %46, %51 : vector<3x128xf32>
    %53 = vector.extract_strided_slice %52 {offsets = [0, 0], sizes = [1, 128], strides = [1, 1]} : vector<3x128xf32> to vector<1x128xf32>
    %cst_31 = arith.constant 1.000000e-01 : f32
    %cst_32 = arith.constant 3.500000e+00 : f32
    %54 = vector.broadcast %cst_31 : f32 to vector<1x128xf32>
    %55 = arith.maximumf %54, %53 : vector<1x128xf32>
    %56 = vector.broadcast %cst_32 : f32 to vector<1x128xf32>
    %57 = arith.minimumf %56, %55 : vector<1x128xf32>
    %58 = vector.extract_strided_slice %52 {offsets = [1, 0], sizes = [1, 128], strides = [1, 1]} : vector<3x128xf32> to vector<1x128xf32>
    %cst_33 = arith.constant 1.000000e+00 : f32
    %59 = vector.broadcast %cst_33 : f32 to vector<1x128xf32>
    %60 = arith.minimumf %58, %59 : vector<1x128xf32>
    %61 = vector.extract_strided_slice %52 {offsets = [2, 0], sizes = [1, 128], strides = [1, 1]} : vector<3x128xf32> to vector<1x128xf32>
    %cst_34 = arith.constant 1.000000e-01 : f32
    %cst_35 = arith.constant 2.000000e+01 : f32
    %62 = vector.broadcast %cst_34 : f32 to vector<1x128xf32>
    %63 = arith.maximumf %62, %61 : vector<1x128xf32>
    %64 = vector.broadcast %cst_35 : f32 to vector<1x128xf32>
    %65 = arith.minimumf %64, %63 : vector<1x128xf32>
    %c0_36 = arith.constant 0 : index
    %c0_37 = arith.constant 0 : index
    %66 = vector.load %arg11[%c0_36, %c0_37] : memref<16x1xf32, #tpu.memory_space<vmem>>, vector<16x1xf32>
    %67 = vector.broadcast %66 : vector<16x1xf32> to vector<16x128xf32>
    %68 = vector.broadcast %65 : vector<1x128xf32> to vector<16x128xf32>
    %69 = arith.mulf %67, %68 : vector<16x128xf32>
    %70 = math.exp %69 : vector<16x128xf32>
    %71 = vector.broadcast %60 : vector<1x128xf32> to vector<16x128xf32>
    %72 = arith.mulf %71, %70 : vector<16x128xf32>
    %cst_38 = arith.constant 1.000000e+00 : f32
    %73 = vector.broadcast %cst_38 : f32 to vector<16x128xf32>
    %74 = arith.subf %73, %72 : vector<16x128xf32>
    %75 = vector.broadcast %57 : vector<1x128xf32> to vector<16x128xf32>
    %76 = arith.mulf %75, %74 : vector<16x128xf32>
    %c0_39 = arith.constant 0 : index
    %c0_40 = arith.constant 0 : index
    %77 = vector.load %arg10[%c0_39, %c0_40] : memref<16x1xf32, #tpu.memory_space<vmem>>, vector<16x1xf32>
    %78 = vector.broadcast %77 : vector<16x1xf32> to vector<16x128xf32>
    %79 = arith.mulf %78, %76 : vector<16x128xf32>
    %80 = math.exp %79 : vector<16x128xf32>
    %c0_41 = arith.constant 0 : index
    %c0_42 = arith.constant 0 : index
    %81 = vector.load %arg15[%c0_41, %c0_42] : memref<16x128xf32, #tpu.memory_space<vmem>>, vector<16x128xf32>
    tpu.vector_store %arg15[%c0_41, %c0_42], %80 {strides = array<i32>} : memref<16x128xf32, #tpu.memory_space<vmem>>, vector<16x128xf32>,
    %c0_43 = arith.constant 0 : index
    %c0_44 = arith.constant 0 : index
    %82 = vector.load %arg16[%c0_43, %c0_44] : memref<16x128xf32, #tpu.memory_space<vmem>>, vector<16x128xf32>
    tpu.vector_store %arg16[%c0_43, %c0_44], %76 {strides = array<i32>} : memref<16x128xf32, #tpu.memory_space<vmem>>, vector<16x128xf32>,
    %83 = tpu.concatenate %57, %60, %65 in 0 : vector<1x128xf32>, vector<1x128xf32>, vector<1x128xf32> -> vector<3x128xf32>
    %c0_45 = arith.constant 0 : index
    %c0_46 = arith.constant 0 : index
    %84 = vector.load %arg17[%c0_45, %c0_46] : memref<3x128xf32, #tpu.memory_space<vmem>>, vector<3x128xf32>
    tpu.vector_store %arg17[%c0_45, %c0_46], %83 {strides = array<i32>} : memref<3x128xf32, #tpu.memory_space<vmem>>, vector<3x128xf32>,
    return
  }
  func.func @transform_0(%arg0: i32) -> (i32, i32) {
    %c0_i32 = arith.constant 0 : i32
    %c0_i32_0 = arith.constant 0 : i32
    return %c0_i32, %arg0 : i32, i32
  }
  func.func @transform_1(%arg0: i32) -> (i32, i32) {
    %c0_i32 = arith.constant 0 : i32
    %c0_i32_0 = arith.constant 0 : i32
    %c0_i32_1 = arith.constant 0 : i32
    return %c0_i32, %c0_i32_0 : i32, i32
  }
  func.func @transform_2(%arg0: i32) -> (i32, i32) {
    %c0_i32 = arith.constant 0 : i32
    %c0_i32_0 = arith.constant 0 : i32
    %c0_i32_1 = arith.constant 0 : i32
    return %c0_i32, %c0_i32_0 : i32, i32
  }
  func.func @transform_3(%arg0: i32) -> (i32, i32) {
    %c0_i32 = arith.constant 0 : i32
    %c0_i32_0 = arith.constant 0 : i32
    %c0_i32_1 = arith.constant 0 : i32
    return %c0_i32, %c0_i32_0 : i32, i32
  }
  func.func @transform_4(%arg0: i32) -> (i32, i32) {
    %c0_i32 = arith.constant 0 : i32
    %c0_i32_0 = arith.constant 0 : i32
    %c0_i32_1 = arith.constant 0 : i32
    return %c0_i32, %c0_i32_0 : i32, i32
  }
  func.func @transform_5(%arg0: i32) -> (i32, i32) {
    %c0_i32 = arith.constant 0 : i32
    %c0_i32_0 = arith.constant 0 : i32
    %c0_i32_1 = arith.constant 0 : i32
    return %c0_i32, %c0_i32_0 : i32, i32
  }
  func.func @transform_6(%arg0: i32) -> (i32, i32) {
    %c0_i32 = arith.constant 0 : i32
    %c0_i32_0 = arith.constant 0 : i32
    %c0_i32_1 = arith.constant 0 : i32
    return %c0_i32, %c0_i32_0 : i32, i32
  }
  func.func @transform_7(%arg0: i32) -> (i32, i32) {
    %c0_i32 = arith.constant 0 : i32
    %c0_i32_0 = arith.constant 0 : i32
    %c0_i32_1 = arith.constant 0 : i32
    return %c0_i32, %c0_i32_0 : i32, i32
  }
  func.func @transform_8(%arg0: i32) -> (i32, i32) {
    %c0_i32 = arith.constant 0 : i32
    %c0_i32_0 = arith.constant 0 : i32
    %c0_i32_1 = arith.constant 0 : i32
    return %c0_i32, %c0_i32_0 : i32, i32
  }
  func.func @transform_9(%arg0: i32) -> (i32, i32) {
    %c0_i32 = arith.constant 0 : i32
    %c0_i32_0 = arith.constant 0 : i32
    %c0_i32_1 = arith.constant 0 : i32
    return %c0_i32, %c0_i32_0 : i32, i32
  }
  func.func @transform_10(%arg0: i32) -> (i32, i32) {
    %c0_i32 = arith.constant 0 : i32
    %c0_i32_0 = arith.constant 0 : i32
    %c0_i32_1 = arith.constant 0 : i32
    return %c0_i32, %c0_i32_0 : i32, i32
  }
  func.func @transform_11(%arg0: i32) -> i32 {
    %c0_i32 = arith.constant 0 : i32
    %c0_i32_0 = arith.constant 0 : i32
    return %c0_i32 : i32
  }
  func.func @transform_12(%arg0: i32) -> i32 {
    %c0_i32 = arith.constant 0 : i32
    %c0_i32_0 = arith.constant 0 : i32
    return %c0_i32 : i32
  }
  func.func @transform_13(%arg0: i32) -> i32 {
    %c0_i32 = arith.constant 0 : i32
    %c0_i32_0 = arith.constant 0 : i32
    return %c0_i32 : i32
  }
  func.func @transform_14(%arg0: i32) -> (i32, i32) {
    %c0_i32 = arith.constant 0 : i32
    %c0_i32_0 = arith.constant 0 : i32
    return %c0_i32, %arg0 : i32, i32
  }
  func.func @transform_15(%arg0: i32) -> (i32, i32) {
    %c0_i32 = arith.constant 0 : i32
    %c0_i32_0 = arith.constant 0 : i32
    return %c0_i32, %arg0 : i32, i32
  }
  func.func @transform_16(%arg0: i32) -> (i32, i32) {
    %c0_i32 = arith.constant 0 : i32
    %c0_i32_0 = arith.constant 0 : i32
    return %c0_i32, %arg0 : i32, i32
  }
}

</mosaic_0001>

<llo_original>
// kernel: tpu_custom_call.1
$region0: #{tpu_custom_call.1}
  #allocation0 [shape = 'u32[]', space=smem, size = 0x4, offset = 0x4, fixed_abs, tag = 'smem constant byte address 0x4 - core index']
  #allocation1 [shape = 'u32[72,128]{1,0:T(1,128)}', space=vmem, size = 0x9000, scoped, tag = 'internal scratch']
  #allocation2 [shape = 'f32[1]{0:T(128)S(6)}', space=smem, size = 0x200, scoped, tag = 'scoped memory for tpu_custom_call.1']
  #allocation3 [shape = 'f32[1]{0:T(128)S(6)}', space=smem, size = 0x200, scoped, tag = 'scoped memory for tpu_custom_call.1']
  #allocation4 [shape = 'f32[1]{0:T(128)S(6)}', space=smem, size = 0x200, scoped, tag = 'scoped memory for tpu_custom_call.1']
  %s0 = inlined_call_operand.vmem [shape: f32[16,128], index: 0, kind: input, shape index: {}]
  %s1 = inlined_call_operand.vmem [shape: f32[16,16], index: 1, kind: input, shape index: {}]
  %s2 = inlined_call_operand.vmem [shape: f32[16,1], index: 2, kind: input, shape index: {}]
  %s3 = inlined_call_operand.vmem [shape: f32[16,16], index: 3, kind: input, shape index: {}]
  %s4 = inlined_call_operand.vmem [shape: f32[16,1], index: 4, kind: input, shape index: {}]
  %s5 = inlined_call_operand.vmem [shape: f32[16,16], index: 5, kind: input, shape index: {}]
  %s6 = inlined_call_operand.vmem [shape: f32[16,1], index: 6, kind: input, shape index: {}]
  %s7 = inlined_call_operand.vmem [shape: f32[3,16], index: 7, kind: input, shape index: {}]
  %s8 = inlined_call_operand.vmem [shape: f32[3,1], index: 8, kind: input, shape index: {}]
  %s9 = inlined_call_operand.vmem [shape: f32[16,1], index: 9, kind: input, shape index: {}]
  %s10 = inlined_call_operand.vmem [shape: f32[16,1], index: 10, kind: input, shape index: {}]
  %s11 = inlined_call_operand.<no memory space> [shape: f32[1], index: 11, kind: input, shape index: {}]
  %s12 = inlined_call_operand.<no memory space> [shape: f32[1], index: 12, kind: input, shape index: {}]
  %s13 = inlined_call_operand.<no memory space> [shape: f32[1], index: 13, kind: input, shape index: {}]
  %s14 = inlined_call_operand.hbm [shape: f32[16,128], index: 14, kind: output, shape index: {0}]
  %s15 = inlined_call_operand.hbm [shape: f32[16,128], index: 15, kind: output, shape index: {1}]
  %s16 = inlined_call_operand.hbm [shape: f32[3,128], index: 16, kind: output, shape index: {2}]
  %17 = xla_tuple %s14, %s15, %s16
  %s18 = sld [smem:[#allocation0]]
  $region82: #{tpu_custom_call.1} parent=0
    _
  %s20 = ssub.s32 1, %s18
  %s21 = scalar_select 0, %s20, %s18
  %22 = sst [smem:[#allocation2]] %s11
  %23 = sst [smem:[#allocation3]] %s12
  %24 = sst [smem:[#allocation4]] %s13
  $region1: #{tpu_custom_call.1} parent=0
    #allocation5 [shape = 'u8[8192]{0}', space=vmem, size = 0x2000, scoped, tag = 'output window, operand 0, single buffered']
    #allocation6 [shape = 's32[1]{0}', space=sflag, size = 0x4, scoped, tag = 'scoped memory for tpu_custom_call.1']
    #allocation7 [shape = 'u8[8192]{0}', space=vmem, size = 0x2000, scoped, tag = 'output window, operand 1, single buffered']
    #allocation8 [shape = 's32[1]{0}', space=sflag, size = 0x4, scoped, tag = 'scoped memory for tpu_custom_call.1']
    #allocation9 [shape = 'u8[2048]{0}', space=vmem, size = 0x800, scoped, tag = 'output window, operand 2, single buffered']
    %25 = vsyncpa [#allocation6], 0
    %26 = vsyncpa [#allocation8], 0
    // Predicated region
    $region2: #{tpu_custom_call.1} parent=1 // pred_check
      _
    $region3: #{tpu_custom_call.1} parent=1 // pred_check_branch
      %28 = sbr.rel (0) target = $region5
    $region4: #{tpu_custom_call.1} parent=1 // pred_region
      _
    $region5: #{tpu_custom_call.1} parent=1 // pred_fallthru
      _
    // Predicated region
    $region6: #{tpu_custom_call.1} parent=1 // pred_check
      _
    $region7: #{tpu_custom_call.1} parent=1 // pred_check_branch
      %30 = sbr.rel (0) target = $region9
    $region8: #{tpu_custom_call.1} parent=1 // pred_region
      _
    $region9: #{tpu_custom_call.1} parent=1 // pred_fallthru
      _
    // Predicated region
    $region10: #{tpu_custom_call.1} parent=1 // pred_check
      _
    $region11: #{tpu_custom_call.1} parent=1 // pred_check_branch
      %32 = sbr.rel (0) target = $region13
    $region12: #{tpu_custom_call.1} parent=1 // pred_region
      _
    $region13: #{tpu_custom_call.1} parent=1 // pred_fallthru
      _
    // Predicated region
    $region14: #{tpu_custom_call.1} parent=1 // pred_check
      _
    $region15: #{tpu_custom_call.1} parent=1 // pred_check_branch
      %34 = sbr.rel (0) target = $region17
    $region16: #{tpu_custom_call.1} parent=1 // pred_region
      _
    $region17: #{tpu_custom_call.1} parent=1 // pred_fallthru
      _
    // Predicated region
    $region18: #{tpu_custom_call.1} parent=1 // pred_check
      _
    $region19: #{tpu_custom_call.1} parent=1 // pred_check_branch
      %36 = sbr.rel (0) target = $region21
    $region20: #{tpu_custom_call.1} parent=1 // pred_region
      _
    $region21: #{tpu_custom_call.1} parent=1 // pred_fallthru
      _
    // Predicated region
    $region22: #{tpu_custom_call.1} parent=1 // pred_check
      _
    $region23: #{tpu_custom_call.1} parent=1 // pred_check_branch
      %38 = sbr.rel (0) target = $region25
    $region24: #{tpu_custom_call.1} parent=1 // pred_region
      _
    $region25: #{tpu_custom_call.1} parent=1 // pred_fallthru
      _
    // Predicated region
    $region26: #{tpu_custom_call.1} parent=1 // pred_check
      _
    $region27: #{tpu_custom_call.1} parent=1 // pred_check_branch
      %40 = sbr.rel (0) target = $region29
    $region28: #{tpu_custom_call.1} parent=1 // pred_region
      _
    $region29: #{tpu_custom_call.1} parent=1 // pred_fallthru
      _
    // Predicated region
    $region30: #{tpu_custom_call.1} parent=1 // pred_check
      _
    $region31: #{tpu_custom_call.1} parent=1 // pred_check_branch
      %42 = sbr.rel (0) target = $region33
    $region32: #{tpu_custom_call.1} parent=1 // pred_region
      _
    $region33: #{tpu_custom_call.1} parent=1 // pred_fallthru
      _
    // Predicated region
    $region34: #{tpu_custom_call.1} parent=1 // pred_check
      _
    $region35: #{tpu_custom_call.1} parent=1 // pred_check_branch
      %44 = sbr.rel (0) target = $region37
    $region36: #{tpu_custom_call.1} parent=1 // pred_region
      _
    $region37: #{tpu_custom_call.1} parent=1 // pred_fallthru
      _
    // Predicated region
    $region38: #{tpu_custom_call.1} parent=1 // pred_check
      _
    $region39: #{tpu_custom_call.1} parent=1 // pred_check_branch
      %46 = sbr.rel (0) target = $region41
    $region40: #{tpu_custom_call.1} parent=1 // pred_region
      _
    $region41: #{tpu_custom_call.1} parent=1 // pred_fallthru
      _
    // Predicated region
    $region42: #{tpu_custom_call.1} parent=1 // pred_check
      _
    $region43: #{tpu_custom_call.1} parent=1 // pred_check_branch
      %48 = sbr.rel (0) target = $region45
    $region44: #{tpu_custom_call.1} parent=1 // pred_region
      _
    $region45: #{tpu_custom_call.1} parent=1 // pred_fallthru
      _
    // Predicated region
    $region46: #{tpu_custom_call.1} parent=1 // pred_check
      _
    $region47: #{tpu_custom_call.1} parent=1 // pred_check_branch
      %50 = sbr.rel (0) target = $region49
    $region48: #{tpu_custom_call.1} parent=1 // pred_region
      _
    $region49: #{tpu_custom_call.1} parent=1 // pred_fallthru
      _
    // Predicated region
    $region50: #{tpu_custom_call.1} parent=1 // pred_check
      _
    $region51: #{tpu_custom_call.1} parent=1 // pred_check_branch
      %52 = sbr.rel (0) target = $region53
    $region52: #{tpu_custom_call.1} parent=1 // pred_region
      _
    $region53: #{tpu_custom_call.1} parent=1 // pred_fallthru
      _
    // Predicated region
    $region54: #{tpu_custom_call.1} parent=1 // pred_check
      _
    $region55: #{tpu_custom_call.1} parent=1 // pred_check_branch
      %54 = sbr.rel (0) target = $region57
    $region56: #{tpu_custom_call.1} parent=1 // pred_region
      _
    $region57: #{tpu_custom_call.1} parent=1 // pred_fallthru
      _
    %v55 = vld [vmem:[%s0] sm:$0xff]
    %v56 = vld [vmem:[%s0 + $0x8] sm:$0xff]
    %v57 = vld [vmem:[%s1] sm:$0xff]
    %v58 = vld [vmem:[%s1 + $0x8] sm:$0xff]
    %v59 = vld [vmem:[%s2] sm:$0xff]
    %v60 = vld [vmem:[%s2 + $0x8] sm:$0xff]
    %62 = vset.pattern.permute.xlu0 0
    %63 = vperm.xlu0 %62, %v59
    %v64 = vpop.permute.xlu0 %63
    %67 = vset.pattern.permute.xlu0 0
    %68 = vperm.xlu0 %67, %v60
    %v69 = vpop.permute.xlu0 %68
    %vm71 = vcmask 130048
    %v73 = vsel %vm71, %v57, 0
    %v76 = vsel %vm71, %v58, 0
    %78 = vmatpush.msra.mxu0 0.0
    %79 = vmatpush.msra.mxu0 0.0
    %80 = vmatpush.msra.mxu0 0.0
    %81 = vmatpush.msra.mxu0 0.0
    %82 = vmatpush.msra.mxu0 0.0
    %83 = vmatpush.msra.mxu0 0.0
    %84 = vmatpush.msra.mxu0 0.0
    %85 = vmatpush.msra.mxu0 0.0
    %86 = vmatpush.msra.mxu0 0.0
    %87 = vmatpush.msra.mxu0 0.0
    %88 = vmatpush.msra.mxu0 0.0
    %89 = vmatpush.msra.mxu0 0.0
    %90 = vmatpush.msra.mxu0 0.0
    %91 = vmatpush.msra.mxu0 0.0
    %92 = vmatpush.msra.mxu0 %v56
    %93 = vmatpush.msra.mxu0 %v55
    %94 = vmatmul.f32.gmra.mxu0 %v73
    %v95 = vpop.f32.mrf.mxu0
    %v96 = vadd.f32 %v64, %v95
    %97 = vmatmul.f32.gmra.mxu0 %v76
    %v98 = vpop.f32.mrf.mxu0
    %v99 = vadd.f32 %v69, %v98
    %100 = vdwg.mxu0
    %s101 = sld [smem:[#allocation2]]
    %v102 = vmax.f32 %v96, 0.0
    %v103 = vmax.f32 %v99, 0.0
    %v104 = vmin.f32 %v96, 0.0
    %v105 = vmin.f32 %v99, 0.0
    %v106 = vstv %s101
    %v107 = vmul.f32 %v106, %v104
    %v108 = vmul.f32 %v106, %v105
    %v109 = vadd.f32 %v102, %v107
    %v110 = vadd.f32 %v103, %v108
    %v111 = vld [vmem:[%s3] sm:$0xff]
    %v112 = vld [vmem:[%s3 + $0x8] sm:$0xff]
    %v113 = vld [vmem:[%s4] sm:$0xff]
    %v114 = vld [vmem:[%s4 + $0x8] sm:$0xff]
    %116 = vset.pattern.permute.xlu0 0
    %117 = vperm.xlu0 %116, %v113
    %v118 = vpop.permute.xlu0 %117
    %121 = vset.pattern.permute.xlu0 0
    %122 = vperm.xlu0 %121, %v114
    %v123 = vpop.permute.xlu0 %122
    %v126 = vsel %vm71, %v111, 0
    %v129 = vsel %vm71, %v112, 0
    %131 = vmatpush.msra.mxu0 0.0
    %132 = vmatpush.msra.mxu0 0.0
    %133 = vmatpush.msra.mxu0 0.0
    %134 = vmatpush.msra.mxu0 0.0
    %135 = vmatpush.msra.mxu0 0.0
    %136 = vmatpush.msra.mxu0 0.0
    %137 = vmatpush.msra.mxu0 0.0
    %138 = vmatpush.msra.mxu0 0.0
    %139 = vmatpush.msra.mxu0 0.0
    %140 = vmatpush.msra.mxu0 0.0
    %141 = vmatpush.msra.mxu0 0.0
    %142 = vmatpush.msra.mxu0 0.0
    %143 = vmatpush.msra.mxu0 0.0
    %144 = vmatpush.msra.mxu0 0.0
    %145 = vmatpush.msra.mxu0 %v110
    %146 = vmatpush.msra.mxu0 %v109
    %147 = vmatmul.f32.gmra.mxu0 %v126
    %v148 = vpop.f32.mrf.mxu0
    %v149 = vadd.f32 %v118, %v148
    %150 = vmatmul.f32.gmra.mxu0 %v129
    %v151 = vpop.f32.mrf.mxu0
    %v152 = vadd.f32 %v123, %v151
    %153 = vdwg.mxu0
    %s154 = sld [smem:[#allocation3]]
    %v155 = vmax.f32 %v149, 0.0
    %v156 = vmax.f32 %v152, 0.0
    %v157 = vmin.f32 %v149, 0.0
    %v158 = vmin.f32 %v152, 0.0
    %v159 = vstv %s154
    %v160 = vmul.f32 %v159, %v157
    %v161 = vmul.f32 %v159, %v158
    %v162 = vadd.f32 %v155, %v160
    %v163 = vadd.f32 %v156, %v161
    %v164 = vld [vmem:[%s5] sm:$0xff]
    %v165 = vld [vmem:[%s5 + $0x8] sm:$0xff]
    %v166 = vld [vmem:[%s6] sm:$0xff]
    %v167 = vld [vmem:[%s6 + $0x8] sm:$0xff]
    %169 = vset.pattern.permute.xlu0 0
    %170 = vperm.xlu0 %169, %v166
    %v171 = vpop.permute.xlu0 %170
    %174 = vset.pattern.permute.xlu0 0
    %175 = vperm.xlu0 %174, %v167
    %v176 = vpop.permute.xlu0 %175
    %v179 = vsel %vm71, %v164, 0
    %v182 = vsel %vm71, %v165, 0
    %184 = vmatpush.msra.mxu0 0.0
    %185 = vmatpush.msra.mxu0 0.0
    %186 = vmatpush.msra.mxu0 0.0
    %187 = vmatpush.msra.mxu0 0.0
    %188 = vmatpush.msra.mxu0 0.0
    %189 = vmatpush.msra.mxu0 0.0
    %190 = vmatpush.msra.mxu0 0.0
    %191 = vmatpush.msra.mxu0 0.0
    %192 = vmatpush.msra.mxu0 0.0
    %193 = vmatpush.msra.mxu0 0.0
    %194 = vmatpush.msra.mxu0 0.0
    %195 = vmatpush.msra.mxu0 0.0
    %196 = vmatpush.msra.mxu0 0.0
    %197 = vmatpush.msra.mxu0 0.0
    %198 = vmatpush.msra.mxu0 %v163
    %199 = vmatpush.msra.mxu0 %v162
    %200 = vmatmul.f32.gmra.mxu0 %v179
    %v201 = vpop.f32.mrf.mxu0
    %v202 = vadd.f32 %v171, %v201
    %203 = vmatmul.f32.gmra.mxu0 %v182
    %v204 = vpop.f32.mrf.mxu0
    %v205 = vadd.f32 %v176, %v204
    %206 = vdwg.mxu0
    %s207 = sld [smem:[#allocation4]]
    %v208 = vmax.f32 %v202, 0.0
    %v209 = vmax.f32 %v205, 0.0
    %v210 = vmin.f32 %v202, 0.0
    %v211 = vmin.f32 %v205, 0.0
    %v212 = vstv %s207
    %v213 = vmul.f32 %v212, %v210
    %v214 = vmul.f32 %v212, %v211
    %v215 = vadd.f32 %v208, %v213
    %v216 = vadd.f32 %v209, %v214
    %v217 = vld [vmem:[%s7] sm:$0x7]
    %v218 = vld [vmem:[%s8] sm:$0x7]
    %220 = vset.pattern.permute.xlu0 0
    %221 = vperm.xlu0 %220, %v218
    %v222 = vpop.permute.xlu0 %221
    %v225 = vsel %vm71, %v217, 0
    %227 = vmatpush.msra.mxu0 0.0
    %228 = vmatpush.msra.mxu0 0.0
    %229 = vmatpush.msra.mxu0 0.0
    %230 = vmatpush.msra.mxu0 0.0
    %231 = vmatpush.msra.mxu0 0.0
    %232 = vmatpush.msra.mxu0 0.0
    %233 = vmatpush.msra.mxu0 0.0
    %234 = vmatpush.msra.mxu0 0.0
    %235 = vmatpush.msra.mxu0 0.0
    %236 = vmatpush.msra.mxu0 0.0
    %237 = vmatpush.msra.mxu0 0.0
    %238 = vmatpush.msra.mxu0 0.0
    %239 = vmatpush.msra.mxu0 0.0
    %240 = vmatpush.msra.mxu0 0.0
    %241 = vmatpush.msra.mxu0 %v216
    %242 = vmatpush.msra.mxu0 %v215
    %243 = vmatmul.f32.gmra.mxu0 %v225
    %v244 = vpop.f32.mrf.mxu0
    %v245 = vadd.f32 %v222, %v244
    %246 = vdwg.mxu0
    %v247 = vmax.f32 %v245, 0.0
    %v248 = vand.u32 2147483647, %v245
    %v249 = vsub.f32 0.0, %v248
    %v250 = vmul.f32 %v249, 1.442695
    %v251 = vpow.pop %v250
    %v252 = vadd.f32 %v251, 1.0
    %v253 = vlog2.pop %v252
    %v254 = vmul.f32 %v253, 0.6931472
    %v255 = vmul.f32 -0.5, %v251
    %v256 = vadd.f32 %v255, 1.0
    %v257 = vmul.f32 %v256, %v251
    %v258 = vand.u32 2147483647, %v251
    %vm259 = vcmp.lt.f32.partialorder %v258, 0.0004427343
    %v260 = vsel %vm259, %v257, %v254
    %v261 = vadd.f32 %v247, %v260
    %v262 = vmax.f32 %v261, 0.1
    %v263 = vmin.f32 %v262, 3.5
    %v264 = vmin.f32 %v261, 1.0
    %v265 = vmin.f32 %v262, 20.0
    %v266 = vld [vmem:[%s10] sm:$0xff]
    %v267 = vld [vmem:[%s10 + $0x8] sm:$0xff]
    %269 = vset.pattern.permute.xlu0 0
    %270 = vperm.xlu0 %269, %v266
    %v271 = vpop.permute.xlu0 %270
    %274 = vset.pattern.permute.xlu0 0
    %275 = vperm.xlu0 %274, %v267
    %v276 = vpop.permute.xlu0 %275
    %v278 = vperm.slane %v265, 2
    %v279 = vmul.f32 %v271, %v278
    %v280 = vmul.f32 %v276, %v278
    %v281 = vmul.f32 %v279, 1.442695
    %v282 = vpow.pop %v281
    %v283 = vmul.f32 %v280, 1.442695
    %v284 = vpow.pop %v283
    %v285 = vperm.slane %v264, 1
    %v286 = vmul.f32 %v285, %v282
    %v287 = vmul.f32 %v285, %v284
    %v288 = vsub.f32 1.0, %v286
    %v289 = vsub.f32 1.0, %v287
    %v290 = vperm.slane %v263, 0
    %v291 = vmul.f32 %v290, %v288
    %v292 = vmul.f32 %v290, %v289
    %v293 = vld [vmem:[%s9] sm:$0xff]
    %v294 = vld [vmem:[%s9 + $0x8] sm:$0xff]
    %296 = vset.pattern.permute.xlu0 0
    %297 = vperm.xlu0 %296, %v293
    %v298 = vpop.permute.xlu0 %297
    %301 = vset.pattern.permute.xlu0 0
    %302 = vperm.xlu0 %301, %v294
    %v303 = vpop.permute.xlu0 %302
    %v305 = vmul.f32 %v298, %v291
    %v306 = vmul.f32 %v303, %v292
    %v307 = vmul.f32 %v305, 1.442695
    %v308 = vpow.pop %v307
    %v309 = vmul.f32 %v306, 1.442695
    %v310 = vpow.pop %v309
    %311 = vst [vmem:[#allocation5] sm:$0xff] %v308
    %312 = vst [vmem:[#allocation5 + $0x8] sm:$0xff] %v310
    %313 = vst [vmem:[#allocation7] sm:$0xff] %v291
    %314 = vst [vmem:[#allocation7 + $0x8] sm:$0xff] %v292
    %vm315 = vcmask 1040384
    %v316 = vsel %vm315, %v263, %v264
    %vm317 = vcmask 1041408
    %v318 = vsel %vm317, %v316, %v265
    %319 = vst [vmem:[#allocation9] sm:$0x7] %v318
    // Predicated region
    $region58: #{tpu_custom_call.1} parent=1 // pred_check
      _
    $region59: #{tpu_custom_call.1} parent=1 // pred_check_branch
      %321 = sbr.rel (0) target = $region61
    $region60: #{tpu_custom_call.1} parent=1 // pred_region
      %323 = vsyncadd [#allocation6], 0
      %s324 = sshll.u32 [#allocation5], 4
      %s325 = int_to_ptr.vmem [resolvable:$true] %s324
      %s326 = sshll.u32 %s14, 4
      %s327 = int_to_ptr.hbm [resolvable:$true] %s326
      %332 = dma.vmem_to_hbm [thread:$0]  %s325, 256, %s327, [#allocation6], 128, 128, 8
    $region61: #{tpu_custom_call.1} parent=1 // pred_fallthru
      _
    // Predicated region
    $region62: #{tpu_custom_call.1} parent=1 // pred_check
      _
    $region63: #{tpu_custom_call.1} parent=1 // pred_check_branch
      %334 = sbr.rel (0) target = $region65
    $region64: #{tpu_custom_call.1} parent=1 // pred_region
      %336 = vsyncadd [#allocation8], 0
      %s337 = sshll.u32 [#allocation7], 4
      %s338 = int_to_ptr.vmem [resolvable:$true] %s337
      %s339 = sshll.u32 %s15, 4
      %s340 = int_to_ptr.hbm [resolvable:$true] %s339
      %345 = dma.vmem_to_hbm [thread:$0]  %s338, 256, %s340, [#allocation8], 128, 128, 8
    $region65: #{tpu_custom_call.1} parent=1 // pred_fallthru
      _
    // Predicated region
    $region66: #{tpu_custom_call.1} parent=1 // pred_check
      _
    $region67: #{tpu_custom_call.1} parent=1 // pred_check_branch
      %347 = sbr.rel (0) target = $region69
    $region68: #{tpu_custom_call.1} parent=1 // pred_region
      %349 = vsyncadd [#allocation8], 0
      %s351 = sshll.u32 [#allocation9], 4
      %s352 = int_to_ptr.vmem [resolvable:$true] %s351
      %s353 = sshll.u32 %s16, 4
      %s354 = int_to_ptr.hbm [resolvable:$true] %s353
      %356 = dma.vmem_to_hbm [thread:$0]  %s352, 64, %s354, [#allocation8]
    $region69: #{tpu_custom_call.1} parent=1 // pred_fallthru
      _
    // Predicated region
    $region70: #{tpu_custom_call.1} parent=1 // pred_check
      _
    $region71: #{tpu_custom_call.1} parent=1 // pred_check_branch
      %358 = sbr.rel (0) target = $region73
    $region72: #{tpu_custom_call.1} parent=1 // pred_region
      %360 = dma.done [#allocation6], 256
    $region73: #{tpu_custom_call.1} parent=1 // pred_fallthru
      _
    // Predicated region
    $region74: #{tpu_custom_call.1} parent=1 // pred_check
      _
    $region75: #{tpu_custom_call.1} parent=1 // pred_check_branch
      %362 = sbr.rel (0) target = $region77
    $region76: #{tpu_custom_call.1} parent=1 // pred_region
      %364 = dma.done [#allocation8], 256
    $region77: #{tpu_custom_call.1} parent=1 // pred_fallthru
      _
    // Predicated region
    $region78: #{tpu_custom_call.1} parent=1 // pred_check
      _
    $region79: #{tpu_custom_call.1} parent=1 // pred_check_branch
      %366 = sbr.rel (0) target = $region81
    $region80: #{tpu_custom_call.1} parent=1 // pred_region
      %368 = dma.done [#allocation8], 64
    $region81: #{tpu_custom_call.1} parent=1 // pred_fallthru
      _
    %369 = vsyncpa [#allocation6], 1
    %370 = vsyncpa [#allocation8], 1

</llo_original>
